<compile_context>
chip_gen: v6e
topology: v6e:2x2x1
jax: 0.10.0
libtpu: 0.0.40
codegen_flags: <defaults>
</compile_context>

<pallas_src>
import functools

import jax
import jax.numpy as jnp
from jax.experimental import pallas as pl
from jax.experimental.pallas import tpu as pltpu


# ----------------------------- Pallas kernel --------------------------------

def _scale_grad_kernel(mult, g_ref, o_ref):
    # `mult` is a static Python float baked into the kernel (closure/partial).
    # Weak-typed scalar multiply keeps the gradient's native dtype (f32/bf16).
    o_ref[...] = (g_ref[...] * mult).astype(o_ref.dtype)


# --------------------------- layout / tiling helpers -------------------------

_LANE = 128
_TARGET_BLOCK_BYTES = 8 * 1024 * 1024    # ~8 MiB per block
_VMEM_LIMIT_BYTES = 48 * 1024 * 1024     # 2 bufs x (in+out) x 8 MiB = 32 MiB + headroom
_MIN_SPLIT_BYTES = 2 * 1024 * 1024       # above this, force >= _MIN_BLOCKS grid blocks
_MIN_BLOCKS = 4                          # so v7x can shard the grid over both TCs

# Sublane packing alignment by itemsize (f32 -> 8, bf16 -> 16, int8/fp8 -> 32).
_SUBLANE_ALIGN = {4: 8, 2: 16, 1: 32}


def _choose_cols(total):
    """Widest lane-dense width (multiple of 128) that divides `total`, or None."""
    for cols in (4096, 2048, 1024, 512, 256, 128):
        if total % cols == 0:
            return cols
    return None


def _choose_tile_rows(rows, cols, itemsize):
    """Sublane-aligned tile height targeting ~8 MiB blocks, with >=4 blocks
    for multi-MiB gradients so the parallel grid axis spans both v7x TCs."""
    sub = _SUBLANE_ALIGN.get(itemsize, 8)
    bytes_per_row = cols * itemsize
    tile_rows = max(sub, (_TARGET_BLOCK_BYTES // bytes_per_row) // sub * sub)

    total_bytes = rows * bytes_per_row
    if total_bytes >= _MIN_SPLIT_BYTES and rows >= _MIN_BLOCKS * sub:
        cap = max(sub, (rows // _MIN_BLOCKS) // sub * sub)
        tile_rows = min(tile_rows, cap)

    return min(tile_rows, rows)


def _scale_with_jnp(g, multiplier):
    """Plain-JAX fallback: XLA fuses this into the cotangent's producer."""
    return (g * multiplier).astype(g.dtype)


def _scale_with_pallas(g, multiplier):
    """grad_input = multiplier * g, via a lane-dense tiled Pallas kernel."""
    total = int(g.size)
    if total == 0:
        return g

    cols = _choose_cols(total)
    if cols is None:
        # Ragged size (< multiple of 128): never materialize a padded copy of
        # the full array — let XLA fuse a trivial elementwise multiply instead.
        return _scale_with_jnp(g, multiplier)

    orig_shape = g.shape
    dtype = g.dtype
    itemsize = jnp.dtype(dtype).itemsize

    rows = total // cols
    g2d = g.reshape(rows, cols)                       # free, lane-dense view
    tile_rows = _choose_tile_rows(rows, cols, itemsize)
    grid = (pl.cdiv(rows, tile_rows),)                # last block may be partial (masked)

    kernel = functools.partial(_scale_grad_kernel, float(multiplier))

    out2d = pl.pallas_call(
        kernel,
        out_shape=jax.ShapeDtypeStruct((rows, cols), dtype),
        grid_spec=pl.GridSpec(
            grid=grid,
            in_specs=[pl.BlockSpec((tile_rows, cols), lambda i: (i, 0))],
            out_specs=pl.BlockSpec((tile_rows, cols), lambda i: (i, 0)),
        ),
        input_output_aliases={0: 0},                  # donate the cotangent buffer
        cost_estimate=pl.CostEstimate(
            flops=total, transcendentals=0, bytes_accessed=2 * total * itemsize),
        compiler_params=pltpu.CompilerParams(
            dimension_semantics=("parallel",),        # megacore sharding on v7x
            vmem_limit_bytes=_VMEM_LIMIT_BYTES,
        ),
    )(g2d)

    return out2d.reshape(orig_shape)


# ------------------------- MultiplyGradient function -------------------------

@functools.partial(jax.custom_vjp, nondiff_argnums=(1,))
def multiply_gradient(x, gradient_multiplier):
    """JAX equivalent of MultiplyGradientFunction.apply: identity forward,
    gradient scaled by `gradient_multiplier` in backward."""
    return x


def _mg_fwd(x, gradient_multiplier):
    # Forward is a pure identity: return the input itself, no kernel, no copy.
    return x, None


def _mg_bwd(gradient_multiplier, _residuals, g):
    return (_scale_with_pallas(g, gradient_multiplier),)


multiply_gradient.defvjp(_mg_fwd, _mg_bwd)


class MultiplyGradient:
    """Identity forward; scales the gradient by `gradient_multiplier` in backward."""

    def __init__(self, gradient_multiplier):
        self._gradient_multiplier = float(gradient_multiplier)

    def __call__(self, x):
        return multiply_gradient(x, self._gradient_multiplier)


# ----------------------------------- main ------------------------------------

if __name__ == "__main__":
    key = jax.random.PRNGKey(0)
    # NCHW input like the PyTorch module would receive.
    x = jax.random.normal(key, (2, 4, 16, 16), dtype=jnp.float32)

    module = MultiplyGradient(gradient_multiplier=-0.5)

    # Forward: identity (no kernel, no copy).
    y = jax.block_until_ready(module(x))
    assert y.shape == x.shape and y.dtype == x.dtype
    assert jnp.allclose(y, x)

    # Backward: gradient scaled by the multiplier (checked against a simple loss).
    loss_fn = lambda inp: jnp.sum(module(inp) * 3.0)
    grad = jax.block_until_ready(jax.grad(loss_fn)(x))
    assert grad.shape == x.shape and grad.dtype == x.dtype
    assert jnp.allclose(grad, jnp.full_like(x, 3.0 * -0.5))

    # Tiled path: 2 MiB gradient -> 4 lane-dense blocks over a parallel grid.
    big = jax.random.normal(jax.random.PRNGKey(1), (8, 16, 64, 64), dtype=jnp.float32)
    big_grad = jax.block_until_ready(
        jax.grad(lambda inp: jnp.sum(multiply_gradient(inp, 2.0)))(big)
    )
    assert big_grad.shape == big.shape and big_grad.dtype == big.dtype
    assert jnp.allclose(big_grad, jnp.full_like(big, 2.0))

    # Ragged size (not a multiple of 128): fused plain-JAX fallback, no padding.
    ragged = jax.random.normal(jax.random.PRNGKey(2), (3, 5, 7), dtype=jnp.float32)
    ragged_grad = jax.block_until_ready(
        jax.grad(lambda inp: jnp.sum(multiply_gradient(inp, 4.0)))(ragged)
    )
    assert jnp.allclose(ragged_grad, jnp.full_like(ragged, 4.0))

    print("KERNEL_OK")
</pallas_src>

<mosaic_0001>
module attributes {stable_mosaic.version = 11 : i64} {
  func.func @_scale_grad_kernel(%arg0: i32, %arg1: memref<1x2048xf32, #tpu.memory_space<vmem>>, %arg2: memref<1x2048xf32, #tpu.memory_space<vmem>>) attributes {dimension_semantics = [#tpu.dimension_semantics<parallel>], iteration_bounds = array<i64: 1>, scalar_prefetch = 0 : i64, scratch_operands = 0 : i64, tpu.core_type = #tpu.core_type<tc>, window_params = [{transform_indices = @transform_0, window_bounds = array<i64: 1, 2048>}, {transform_indices = @transform_1, window_bounds = array<i64: 1, 2048>}]} {
    %c0 = arith.constant 0 : index
    %c0_0 = arith.constant 0 : index
    %0 = vector.load %arg1[%c0, %c0_0] : memref<1x2048xf32, #tpu.memory_space<vmem>>, vector<1x2048xf32>
    %cst = arith.constant -5.000000e-01 : f32
    %1 = vector.broadcast %cst : f32 to vector<1x2048xf32>
    %2 = arith.mulf %0, %1 : vector<1x2048xf32>
    %c0_1 = arith.constant 0 : index
    %c0_2 = arith.constant 0 : index
    %3 = vector.load %arg2[%c0_1, %c0_2] : memref<1x2048xf32, #tpu.memory_space<vmem>>, vector<1x2048xf32>
    tpu.vector_store %arg2[%c0_1, %c0_2], %2 {strides = array<i32>} : memref<1x2048xf32, #tpu.memory_space<vmem>>, vector<1x2048xf32>,
    return
  }
  func.func @transform_0(%arg0: i32) -> (i32, i32) {
    %c0_i32 = arith.constant 0 : i32
    %c0_i32_0 = arith.constant 0 : i32
    return %arg0, %c0_i32 : i32, i32
  }
  func.func @transform_1(%arg0: i32) -> (i32, i32) {
    %c0_i32 = arith.constant 0 : i32
    %c0_i32_0 = arith.constant 0 : i32
    return %arg0, %c0_i32 : i32, i32
  }
}

</mosaic_0001>

<llo_original>
// kernel: tpu_custom_call.1
$region0: #{tpu_custom_call.1}
  #allocation0 [shape = 'u32[]', space=smem, size = 0x4, offset = 0x4, fixed_abs, tag = 'smem constant byte address 0x4 - core index']
  #allocation1 [shape = 'u32[144,128]{1,0:T(1,128)}', space=vmem, size = 0x12000, scoped, tag = 'internal scratch']
  %s0 = inlined_call_operand.hbm [shape: f32[1,2048], index: 0, kind: input, shape index: {}, may-alias: {0,1}]
  %s1 = inlined_call_operand.hbm [shape: f32[1,2048], index: 1, kind: output, shape index: {}, may-alias: {0,1}]
  %s2 = sld [smem:[#allocation0]]
  $region18: #{tpu_custom_call.1} parent=0
    _
  %s4 = ssub.s32 1, %s2
  %s5 = scalar_select 0, %s4, %s2
  $region1: #{tpu_custom_call.1} parent=0
    #allocation2 [shape = 'u8[8192]{0}', space=vmem, size = 0x2000, scoped, tag = 'input window, operand 0, single buffered']
    #allocation3 [shape = 's32[1]{0}', space=sflag, size = 0x4, scoped, tag = 'scoped memory for tpu_custom_call.1']
    #allocation4 [shape = 's32[1]{0}', space=sflag, size = 0x4, scoped, tag = 'scoped memory for tpu_custom_call.1']
    #allocation5 [shape = 'u8[8192]{0}', space=vmem, size = 0x2000, scoped, tag = 'output window, operand 0, single buffered']
    %6 = vsyncpa [#allocation3], 0
    %7 = vsyncpa [#allocation4], 0
    // Predicated region
    $region2: #{tpu_custom_call.1} parent=1 // pred_check
      _
    $region3: #{tpu_custom_call.1} parent=1 // pred_check_branch
      %9 = sbr.rel (0) target = $region5
    $region4: #{tpu_custom_call.1} parent=1 // pred_region
      %s11 = ssub.s32 256, 256
      %12 = vsyncadd [#allocation3], %s11
      %s14 = sshll.u32 [#allocation2], 4
      %s15 = int_to_ptr.vmem [resolvable:$true] %s14
      %17 = dma.hbm_to_vmem [thread:$0]  %s0, 256, %s15, [#allocation3]
    $region5: #{tpu_custom_call.1} parent=1 // pred_fallthru
      _
    // Predicated region
    $region6: #{tpu_custom_call.1} parent=1 // pred_check
      _
    $region7: #{tpu_custom_call.1} parent=1 // pred_check_branch
      %19 = sbr.rel (0) target = $region9
    $region8: #{tpu_custom_call.1} parent=1 // pred_region
      %20 = dma.done [#allocation3], 256
    $region9: #{tpu_custom_call.1} parent=1 // pred_fallthru
      _
    %v21 = vld [vmem:[#allocation2] sm:$0xff]
    %v22 = vld [vmem:[#allocation2 + $0x8] sm:$0xff]
    %v23 = vmul.f32 %v21, -0.5
    %v24 = vmul.f32 %v22, -0.5
    %25 = vst [vmem:[#allocation5] sm:$0xff] %v23
    %26 = vst [vmem:[#allocation5 + $0x8] sm:$0xff] %v24
    // Predicated region
    $region10: #{tpu_custom_call.1} parent=1 // pred_check
      _
    $region11: #{tpu_custom_call.1} parent=1 // pred_check_branch
      %28 = sbr.rel (0) target = $region13
    $region12: #{tpu_custom_call.1} parent=1 // pred_region
      %s30 = ssub.s32 256, 256
      %31 = vsyncadd [#allocation4], %s30
      %s33 = sshll.u32 [#allocation5], 4
      %s34 = int_to_ptr.vmem [resolvable:$true] %s33
      %36 = dma.vmem_to_hbm [thread:$0]  %s34, 256, %s1, [#allocation4]
    $region13: #{tpu_custom_call.1} parent=1 // pred_fallthru
      _
    // Predicated region
    $region14: #{tpu_custom_call.1} parent=1 // pred_check
      _
    $region15: #{tpu_custom_call.1} parent=1 // pred_check_branch
      %38 = sbr.rel (0) target = $region17
    $region16: #{tpu_custom_call.1} parent=1 // pred_region
      %39 = dma.done [#allocation4], 256
    $region17: #{tpu_custom_call.1} parent=1 // pred_fallthru
      _
    %40 = vsyncpa [#allocation3], 1
    %41 = vsyncpa [#allocation4], 1

</llo_original>
